<compile_context>
chip_gen: v5e
topology: v5e:2x2
jax: 0.10.0
libtpu: 0.0.40
codegen_flags: <defaults>
</compile_context>

<pallas_src>
import jax
import jax.numpy as jnp
from jax import lax
from jax.experimental import pallas as pl
from jax.experimental.pallas import tpu as pltpu


def _leaky_relu(x, slope=0.2):
    return jnp.where(x > 0, x, slope * x)


def _round_up(n, m):
    return ((n + m - 1) // m) * m


def _make_generator_kernel(sub, num_sub, matmul_dtype):
    """Build the fused MLP kernel for a fixed sub-slab size / count."""

    def kernel(x_ref,
               w1_ref, b1_ref,
               w2_ref, b2_ref,
               w3_ref, b3_ref,
               w4_ref, b4_ref,
               o_ref):
        # x_ref: (TB, z_dim)   -- one contiguous HBM chunk per grid step
        # w_i  : (out_i, in_i) -- PyTorch layout, VMEM-resident across steps
        # b_i  : (out_i, 1)    -- f32, broadcasts along lanes
        # o_ref: (TB, out_dim)

        def process(off):
            x_blk = x_ref[pl.ds(off, sub), :]                    # (sub, z_dim)
            if matmul_dtype is not None:
                # In-kernel cast rides idle VPU slots; avoids a wrapper pass.
                x_blk = x_blk.astype(matmul_dtype)

            # h1^T = W1 @ x^T  (NT contraction; batch -> lane axis, no transpose)
            h = lax.dot_general(
                w1_ref[...], x_blk,
                dimension_numbers=(((1,), (1,)), ((), ())),
                preferred_element_type=jnp.float32) + b1_ref[...]
            h = _leaky_relu(h)

            h = jnp.dot(w2_ref[...], h.astype(w2_ref.dtype),
                        preferred_element_type=jnp.float32) + b2_ref[...]
            h = _leaky_relu(h)

            h = jnp.dot(w3_ref[...], h.astype(w3_ref.dtype),
                        preferred_element_type=jnp.float32) + b3_ref[...]
            h = _leaky_relu(h)

            h = jnp.dot(w4_ref[...], h.astype(w4_ref.dtype),
                        preferred_element_type=jnp.float32) + b4_ref[...]

            # (out_dim, sub) -> (sub, out_dim) on the (idle) XLU, then store.
            o_ref[pl.ds(off, sub), :] = jnp.tanh(h).T.astype(o_ref.dtype)

        if num_sub == 1:
            process(0)
        else:
            def body(j, carry):
                process(pl.multiple_of(j * sub, sub))
                return carry

            lax.fori_loop(0, num_sub, body, 0, unroll=True)

    return kernel


def generator_forward(x, params, z_dim, *, block_b=2048, matmul_dtype=None,
                      out_dtype=jnp.float32):
    """Equivalent of Generator.forward(x, z_dim).

    x: any shape with leading batch dim whose remaining dims flatten to z_dim.
    params: dict with w1..w4 of shape (out, in) and b1..b4 of shape (out, 1).
    block_b: batch tile size (rows per grid step). Must be a multiple of 128.
    matmul_dtype: optional dtype (e.g. jnp.bfloat16) for the dot inputs on
        v6e/v7x; accumulation and all element-wise math stay in f32.
        NOTE: hidden activations are also quantized between layers in this mode.
    out_dtype: output dtype (bf16 halves store-side HBM bytes if the consumer
        tolerates it).
    """
    assert block_b % 128 == 0, "block_b must be a multiple of 128"

    b = x.shape[0]
    x2d = x.reshape(b, z_dim)          # x.view(x.size(0), z_dim); no transpose

    ws = [params[f"w{i}"] for i in range(1, 5)]
    bs = [params[f"b{i}"].astype(jnp.float32) for i in range(1, 5)]
    if matmul_dtype is not None:
        # Tiny one-time cast of the weights only; x is cast inside the kernel.
        ws = [w.astype(matmul_dtype) for w in ws]

    out_dim = ws[3].shape[0]

    # ---- batch tiling ------------------------------------------------------
    b_pad128 = _round_up(b, 128)
    tb = min(block_b, b_pad128)
    # v7x megacore: keep >= 2 batch tiles whenever the batch allows a split so
    # the "parallel" grid axis can be sharded across both TensorCores.
    if b_pad128 // tb < 2 and b_pad128 >= 256:
        tb = _round_up(b_pad128 // 2, 128)
    b_pad = _round_up(b_pad128, tb)
    if b_pad != b:
        # Padded rows are zeros; they flow through tanh(bias) and are sliced
        # off below (no NaN risk).
        x2d = jnp.pad(x2d, ((0, b_pad - b), (0, 0)))
    grid = (b_pad // tb,)

    # In-kernel sub-slab size (<=512 lanes of live f32 activations), chosen to
    # divide the tile so the unrolled inner loop has a static trip count.
    if tb <= 512:
        sub = tb
    else:
        sub = next(c for c in (512, 384, 256, 128) if tb % c == 0)
    num_sub = tb // sub

    kernel = _make_generator_kernel(sub, num_sub, matmul_dtype)

    def resident_spec(shape):
        # Weights / biases: same full block every step -> stays in VMEM.
        return pl.BlockSpec(shape, lambda i: (0, 0))

    operands = (x2d,
                ws[0], bs[0],
                ws[1], bs[1],
                ws[2], bs[2],
                ws[3], bs[3])
    in_specs = ([pl.BlockSpec((tb, z_dim), lambda i: (i, 0))]
                + [resident_spec(op.shape) for op in operands[1:]])

    out = pl.pallas_call(
        kernel,
        grid=grid,
        out_shape=jax.ShapeDtypeStruct((b_pad, out_dim), out_dtype),
        in_specs=in_specs,
        out_specs=pl.BlockSpec((tb, out_dim), lambda i: (i, 0)),
        compiler_params=pltpu.CompilerParams(
            dimension_semantics=("parallel",)),
    )(*operands)

    # Already in the module's (batch, out) layout; just drop batch padding.
    return out[:b]


def init_params(key, input_dim, h1, h2, h3, out_dim, dtype=jnp.float32):
    """PyTorch-Linear-like init: weights (out, in), biases (out, 1)."""
    dims = [(input_dim, h1), (h1, h2), (h2, h3), (h3, out_dim)]
    params = {}
    for idx, (fan_in, fan_out) in enumerate(dims, start=1):
        key, kw, kb = jax.random.split(key, 3)
        bound = 1.0 / (fan_in ** 0.5)
        params[f"w{idx}"] = jax.random.uniform(
            kw, (fan_out, fan_in), dtype=dtype, minval=-bound, maxval=bound)
        params[f"b{idx}"] = jax.random.uniform(
            kb, (fan_out, 1), dtype=dtype, minval=-bound, maxval=bound)
    return params


def generator_reference(x, params, z_dim):
    """Pure-JAX reference for correctness checking."""
    b = x.shape[0]
    h = x.reshape(b, z_dim).astype(jnp.float32)
    for i in range(1, 4):
        w = params[f"w{i}"].astype(jnp.float32)
        bb = params[f"b{i}"].astype(jnp.float32)
        h = h @ w.T + bb.T
        h = jnp.where(h > 0, h, 0.2 * h)
    w = params["w4"].astype(jnp.float32)
    bb = params["b4"].astype(jnp.float32)
    h = h @ w.T + bb.T
    return jnp.tanh(h)


if __name__ == "__main__":
    key = jax.random.PRNGKey(0)
    k_param, k_x, k_x2, k_x3 = jax.random.split(key, 4)

    # Shapes consistent with the module: z_dim=16, h1=32, h2=64, h3=32, out=16.
    z_dim, h1, h2, h3, out_dim = 16, 32, 64, 32, 16
    params = init_params(k_param, z_dim, h1, h2, h3, out_dim)

    # ---- f32 path, single tile (exact vs reference) -------------------------
    batch = 8
    x = jax.random.normal(k_x, (batch, 4, 4), dtype=jnp.float32)  # viewed as (B, z_dim)
    out = jax.block_until_ready(generator_forward(x, params, z_dim))
    ref = generator_reference(x, params, z_dim)
    assert out.shape == (batch, out_dim), out.shape
    assert jnp.allclose(out, ref, atol=1e-5, rtol=1e-5), "f32 mismatch vs reference"

    # ---- bf16-matmul path, multi-tile grid + batch padding -------------------
    batch2 = 300                      # 3 grid steps at TB=128, 84 padded rows
    x2 = jax.random.normal(k_x2, (batch2, 4, 4), dtype=jnp.float32)
    out2 = jax.block_until_ready(
        generator_forward(x2, params, z_dim, block_b=128,
                          matmul_dtype=jnp.bfloat16))
    ref2 = generator_reference(x2, params, z_dim)
    assert out2.shape == (batch2, out_dim), out2.shape
    assert jnp.allclose(out2, ref2, atol=2e-2, rtol=2e-2), "bf16 mismatch vs reference"

    # ---- f32 path, large batch: 2-tile megacore split + in-kernel sub-slabs --
    batch3 = 2048                     # tb=1024 (2 tiles), sub=512, num_sub=2
    x3 = jax.random.normal(k_x3, (batch3, 4, 4), dtype=jnp.float32)
    out3 = jax.block_until_ready(generator_forward(x3, params, z_dim))
    ref3 = generator_reference(x3, params, z_dim)
    assert out3.shape == (batch3, out_dim), out3.shape
    assert jnp.allclose(out3, ref3, atol=1e-4, rtol=1e-4), "large-batch mismatch"

    print("KERNEL_OK")
</pallas_src>

<mosaic_0001>
module attributes {stable_mosaic.version = 11 : i64} {
  func.func @kernel(%arg0: i32, %arg1: memref<128x16xf32, #tpu.memory_space<vmem>>, %arg2: memref<32x16xf32, #tpu.memory_space<vmem>>, %arg3: memref<32x1xf32, #tpu.memory_space<vmem>>, %arg4: memref<64x32xf32, #tpu.memory_space<vmem>>, %arg5: memref<64x1xf32, #tpu.memory_space<vmem>>, %arg6: memref<32x64xf32, #tpu.memory_space<vmem>>, %arg7: memref<32x1xf32, #tpu.memory_space<vmem>>, %arg8: memref<16x32xf32, #tpu.memory_space<vmem>>, %arg9: memref<16x1xf32, #tpu.memory_space<vmem>>, %arg10: memref<128x16xf32, #tpu.memory_space<vmem>>) attributes {dimension_semantics = [#tpu.dimension_semantics<parallel>], iteration_bounds = array<i64: 1>, scalar_prefetch = 0 : i64, scratch_operands = 0 : i64, tpu.core_type = #tpu.core_type<tc>, window_params = [{transform_indices = @transform_0, window_bounds = array<i64: 128, 16>}, {pipeline_mode = #tpu.pipeline_mode<synchronous>, transform_indices = @transform_1, window_bounds = array<i64: 32, 16>}, {pipeline_mode = #tpu.pipeline_mode<synchronous>, transform_indices = @transform_2, window_bounds = array<i64: 32, 1>}, {pipeline_mode = #tpu.pipeline_mode<synchronous>, transform_indices = @transform_3, window_bounds = array<i64: 64, 32>}, {pipeline_mode = #tpu.pipeline_mode<synchronous>, transform_indices = @transform_4, window_bounds = array<i64: 64, 1>}, {pipeline_mode = #tpu.pipeline_mode<synchronous>, transform_indices = @transform_5, window_bounds = array<i64: 32, 64>}, {pipeline_mode = #tpu.pipeline_mode<synchronous>, transform_indices = @transform_6, window_bounds = array<i64: 32, 1>}, {pipeline_mode = #tpu.pipeline_mode<synchronous>, transform_indices = @transform_7, window_bounds = array<i64: 16, 32>}, {pipeline_mode = #tpu.pipeline_mode<synchronous>, transform_indices = @transform_8, window_bounds = array<i64: 16, 1>}, {transform_indices = @transform_9, window_bounds = array<i64: 128, 16>}]} {
    %c0 = arith.constant 0 : index
    %c0_0 = arith.constant 0 : index
    %0 = vector.load %arg1[%c0, %c0_0] : memref<128x16xf32, #tpu.memory_space<vmem>>, vector<128x16xf32>
    %c0_1 = arith.constant 0 : index
    %c0_2 = arith.constant 0 : index
    %1 = vector.load %arg2[%c0_1, %c0_2] : memref<32x16xf32, #tpu.memory_space<vmem>>, vector<32x16xf32>
    %cst = arith.constant dense<0.000000e+00> : vector<32x128xf32>
    %2 = tpu.matmul %1, %0, %cst {dimension_numbers = #tpu.dot_dimension_numbers<[1], [1], [0], [0], [0, 0, 1, 0], [], []>} : vector<32x16xf32>, vector<128x16xf32>, vector<32x128xf32> -> vector<32x128xf32>
    %c0_3 = arith.constant 0 : index
    %c0_4 = arith.constant 0 : index
    %3 = vector.load %arg3[%c0_3, %c0_4] : memref<32x1xf32, #tpu.memory_space<vmem>>, vector<32x1xf32>
    %4 = vector.broadcast %3 : vector<32x1xf32> to vector<32x128xf32>
    %5 = arith.addf %2, %4 : vector<32x128xf32>
    %cst_5 = arith.constant 0.000000e+00 : f32
    %6 = vector.broadcast %cst_5 : f32 to vector<32x128xf32>
    %7 = arith.cmpf ogt, %5, %6 : vector<32x128xf32>
    %cst_6 = arith.constant 2.000000e-01 : f32
    %8 = vector.broadcast %cst_6 : f32 to vector<32x128xf32>
    %9 = arith.mulf %8, %5 : vector<32x128xf32>
    %10 = arith.select %7, %5, %9 : vector<32x128xi1>, vector<32x128xf32>
    %c0_7 = arith.constant 0 : index
    %c0_8 = arith.constant 0 : index
    %11 = vector.load %arg4[%c0_7, %c0_8] : memref<64x32xf32, #tpu.memory_space<vmem>>, vector<64x32xf32>
    %cst_9 = arith.constant dense<0.000000e+00> : vector<64x128xf32>
    %12 = tpu.matmul %11, %10, %cst_9 {dimension_numbers = #tpu.dot_dimension_numbers<[1], [0], [0], [1], [0, 0, 1, 1], [], []>} : vector<64x32xf32>, vector<32x128xf32>, vector<64x128xf32> -> vector<64x128xf32>
    %c0_10 = arith.constant 0 : index
    %c0_11 = arith.constant 0 : index
    %13 = vector.load %arg5[%c0_10, %c0_11] : memref<64x1xf32, #tpu.memory_space<vmem>>, vector<64x1xf32>
    %14 = vector.broadcast %13 : vector<64x1xf32> to vector<64x128xf32>
    %15 = arith.addf %12, %14 : vector<64x128xf32>
    %cst_12 = arith.constant 0.000000e+00 : f32
    %16 = vector.broadcast %cst_12 : f32 to vector<64x128xf32>
    %17 = arith.cmpf ogt, %15, %16 : vector<64x128xf32>
    %cst_13 = arith.constant 2.000000e-01 : f32
    %18 = vector.broadcast %cst_13 : f32 to vector<64x128xf32>
    %19 = arith.mulf %18, %15 : vector<64x128xf32>
    %20 = arith.select %17, %15, %19 : vector<64x128xi1>, vector<64x128xf32>
    %c0_14 = arith.constant 0 : index
    %c0_15 = arith.constant 0 : index
    %21 = vector.load %arg6[%c0_14, %c0_15] : memref<32x64xf32, #tpu.memory_space<vmem>>, vector<32x64xf32>
    %cst_16 = arith.constant dense<0.000000e+00> : vector<32x128xf32>
    %22 = tpu.matmul %21, %20, %cst_16 {dimension_numbers = #tpu.dot_dimension_numbers<[1], [0], [0], [1], [0, 0, 1, 1], [], []>} : vector<32x64xf32>, vector<64x128xf32>, vector<32x128xf32> -> vector<32x128xf32>
    %c0_17 = arith.constant 0 : index
    %c0_18 = arith.constant 0 : index
    %23 = vector.load %arg7[%c0_17, %c0_18] : memref<32x1xf32, #tpu.memory_space<vmem>>, vector<32x1xf32>
    %24 = vector.broadcast %23 : vector<32x1xf32> to vector<32x128xf32>
    %25 = arith.addf %22, %24 : vector<32x128xf32>
    %cst_19 = arith.constant 0.000000e+00 : f32
    %26 = vector.broadcast %cst_19 : f32 to vector<32x128xf32>
    %27 = arith.cmpf ogt, %25, %26 : vector<32x128xf32>
    %cst_20 = arith.constant 2.000000e-01 : f32
    %28 = vector.broadcast %cst_20 : f32 to vector<32x128xf32>
    %29 = arith.mulf %28, %25 : vector<32x128xf32>
    %30 = arith.select %27, %25, %29 : vector<32x128xi1>, vector<32x128xf32>
    %c0_21 = arith.constant 0 : index
    %c0_22 = arith.constant 0 : index
    %31 = vector.load %arg8[%c0_21, %c0_22] : memref<16x32xf32, #tpu.memory_space<vmem>>, vector<16x32xf32>
    %cst_23 = arith.constant dense<0.000000e+00> : vector<16x128xf32>
    %32 = tpu.matmul %31, %30, %cst_23 {dimension_numbers = #tpu.dot_dimension_numbers<[1], [0], [0], [1], [0, 0, 1, 1], [], []>} : vector<16x32xf32>, vector<32x128xf32>, vector<16x128xf32> -> vector<16x128xf32>
    %c0_24 = arith.constant 0 : index
    %c0_25 = arith.constant 0 : index
    %33 = vector.load %arg9[%c0_24, %c0_25] : memref<16x1xf32, #tpu.memory_space<vmem>>, vector<16x1xf32>
    %34 = vector.broadcast %33 : vector<16x1xf32> to vector<16x128xf32>
    %35 = arith.addf %32, %34 : vector<16x128xf32>
    %36 = math.tanh %35 : vector<16x128xf32>
    %37 = tpu.transpose %36, [1, 0] : vector<16x128xf32> -> vector<128x16xf32>
    %c0_26 = arith.constant 0 : index
    %c0_27 = arith.constant 0 : index
    %38 = vector.load %arg10[%c0_26, %c0_27] : memref<128x16xf32, #tpu.memory_space<vmem>>, vector<128x16xf32>
    tpu.vector_store %arg10[%c0_26, %c0_27], %37 {strides = array<i32>} : memref<128x16xf32, #tpu.memory_space<vmem>>, vector<128x16xf32>,
    return
  }
  func.func @transform_0(%arg0: i32) -> (i32, i32) {
    %c0_i32 = arith.constant 0 : i32
    %c0_i32_0 = arith.constant 0 : i32
    return %arg0, %c0_i32 : i32, i32
  }
  func.func @transform_1(%arg0: i32) -> (i32, i32) {
    %c0_i32 = arith.constant 0 : i32
    %c0_i32_0 = arith.constant 0 : i32
    %c0_i32_1 = arith.constant 0 : i32
    return %c0_i32, %c0_i32_0 : i32, i32
  }
  func.func @transform_2(%arg0: i32) -> (i32, i32) {
    %c0_i32 = arith.constant 0 : i32
    %c0_i32_0 = arith.constant 0 : i32
    %c0_i32_1 = arith.constant 0 : i32
    return %c0_i32, %c0_i32_0 : i32, i32
  }
  func.func @transform_3(%arg0: i32) -> (i32, i32) {
    %c0_i32 = arith.constant 0 : i32
    %c0_i32_0 = arith.constant 0 : i32
    %c0_i32_1 = arith.constant 0 : i32
    return %c0_i32, %c0_i32_0 : i32, i32
  }
  func.func @transform_4(%arg0: i32) -> (i32, i32) {
    %c0_i32 = arith.constant 0 : i32
    %c0_i32_0 = arith.constant 0 : i32
    %c0_i32_1 = arith.constant 0 : i32
    return %c0_i32, %c0_i32_0 : i32, i32
  }
  func.func @transform_5(%arg0: i32) -> (i32, i32) {
    %c0_i32 = arith.constant 0 : i32
    %c0_i32_0 = arith.constant 0 : i32
    %c0_i32_1 = arith.constant 0 : i32
    return %c0_i32, %c0_i32_0 : i32, i32
  }
  func.func @transform_6(%arg0: i32) -> (i32, i32) {
    %c0_i32 = arith.constant 0 : i32
    %c0_i32_0 = arith.constant 0 : i32
    %c0_i32_1 = arith.constant 0 : i32
    return %c0_i32, %c0_i32_0 : i32, i32
  }
  func.func @transform_7(%arg0: i32) -> (i32, i32) {
    %c0_i32 = arith.constant 0 : i32
    %c0_i32_0 = arith.constant 0 : i32
    %c0_i32_1 = arith.constant 0 : i32
    return %c0_i32, %c0_i32_0 : i32, i32
  }
  func.func @transform_8(%arg0: i32) -> (i32, i32) {
    %c0_i32 = arith.constant 0 : i32
    %c0_i32_0 = arith.constant 0 : i32
    %c0_i32_1 = arith.constant 0 : i32
    return %c0_i32, %c0_i32_0 : i32, i32
  }
  func.func @transform_9(%arg0: i32) -> (i32, i32) {
    %c0_i32 = arith.constant 0 : i32
    %c0_i32_0 = arith.constant 0 : i32
    return %arg0, %c0_i32 : i32, i32
  }
}

</mosaic_0001>

<llo_original>
// kernel: tpu_custom_call.1
$region0: #{tpu_custom_call.1}
  #allocation0 [shape = 'u32[]', space=smem, size = 0x4, offset = 0x4, fixed_abs, tag = 'smem constant byte address 0x4 - core index']
  #allocation1 [shape = 'u32[72,128]{1,0:T(1,128)}', space=vmem, size = 0x9000, scoped, tag = 'internal scratch']
  %s0 = inlined_call_operand.vmem [shape: f32[128,16], index: 0, kind: input, shape index: {}]
  %s1 = inlined_call_operand.vmem [shape: f32[32,16], index: 1, kind: input, shape index: {}]
  %s2 = inlined_call_operand.vmem [shape: f32[32,1], index: 2, kind: input, shape index: {}]
  %s3 = inlined_call_operand.vmem [shape: f32[64,32], index: 3, kind: input, shape index: {}]
  %s4 = inlined_call_operand.vmem [shape: f32[64,1], index: 4, kind: input, shape index: {}]
  %s5 = inlined_call_operand.vmem [shape: f32[32,64], index: 5, kind: input, shape index: {}]
  %s6 = inlined_call_operand.vmem [shape: f32[32,1], index: 6, kind: input, shape index: {}]
  %s7 = inlined_call_operand.vmem [shape: f32[16,32], index: 7, kind: input, shape index: {}]
  %s8 = inlined_call_operand.vmem [shape: f32[16,1], index: 8, kind: input, shape index: {}]
  %s9 = inlined_call_operand.vmem [shape: f32[128,16], index: 9, kind: output, shape index: {}]
  %s10 = sld [smem:[#allocation0]]
  $region46: #{tpu_custom_call.1} parent=0
    _
  %s12 = ssub.s32 1, %s10
  %s13 = scalar_select 0, %s12, %s10
  // Predicated region
  $region2: #{tpu_custom_call.1} parent=0 // pred_check
    _
  $region3: #{tpu_custom_call.1} parent=0 // pred_check_branch
    %15 = sbr.rel (0) target = $region5
  $region4: #{tpu_custom_call.1} parent=0 // pred_region
    _
  $region5: #{tpu_custom_call.1} parent=0 // pred_fallthru
    _
  // Predicated region
  $region6: #{tpu_custom_call.1} parent=0 // pred_check
    _
  $region7: #{tpu_custom_call.1} parent=0 // pred_check_branch
    %17 = sbr.rel (0) target = $region9
  $region8: #{tpu_custom_call.1} parent=0 // pred_region
    _
  $region9: #{tpu_custom_call.1} parent=0 // pred_fallthru
    _
  // Predicated region
  $region10: #{tpu_custom_call.1} parent=0 // pred_check
    _
  $region11: #{tpu_custom_call.1} parent=0 // pred_check_branch
    %19 = sbr.rel (0) target = $region13
  $region12: #{tpu_custom_call.1} parent=0 // pred_region
    _
  $region13: #{tpu_custom_call.1} parent=0 // pred_fallthru
    _
  // Predicated region
  $region14: #{tpu_custom_call.1} parent=0 // pred_check
    _
  $region15: #{tpu_custom_call.1} parent=0 // pred_check_branch
    %21 = sbr.rel (0) target = $region17
  $region16: #{tpu_custom_call.1} parent=0 // pred_region
    _
  $region17: #{tpu_custom_call.1} parent=0 // pred_fallthru
    _
  // Predicated region
  $region18: #{tpu_custom_call.1} parent=0 // pred_check
    _
  $region19: #{tpu_custom_call.1} parent=0 // pred_check_branch
    %23 = sbr.rel (0) target = $region21
  $region20: #{tpu_custom_call.1} parent=0 // pred_region
    _
  $region21: #{tpu_custom_call.1} parent=0 // pred_fallthru
    _
  // Predicated region
  $region22: #{tpu_custom_call.1} parent=0 // pred_check
    _
  $region23: #{tpu_custom_call.1} parent=0 // pred_check_branch
    %25 = sbr.rel (0) target = $region25
  $region24: #{tpu_custom_call.1} parent=0 // pred_region
    _
  $region25: #{tpu_custom_call.1} parent=0 // pred_fallthru
    _
  // Predicated region
  $region26: #{tpu_custom_call.1} parent=0 // pred_check
    _
  $region27: #{tpu_custom_call.1} parent=0 // pred_check_branch
    %27 = sbr.rel (0) target = $region29
  $region28: #{tpu_custom_call.1} parent=0 // pred_region
    _
  $region29: #{tpu_custom_call.1} parent=0 // pred_fallthru
    _
  // Predicated region
  $region30: #{tpu_custom_call.1} parent=0 // pred_check
    _
  $region31: #{tpu_custom_call.1} parent=0 // pred_check_branch
    %29 = sbr.rel (0) target = $region33
  $region32: #{tpu_custom_call.1} parent=0 // pred_region
    _
  $region33: #{tpu_custom_call.1} parent=0 // pred_fallthru
    _
  // Predicated region
  $region34: #{tpu_custom_call.1} parent=0 // pred_check
    _
  $region35: #{tpu_custom_call.1} parent=0 // pred_check_branch
    %31 = sbr.rel (0) target = $region37
  $region36: #{tpu_custom_call.1} parent=0 // pred_region
    _
  $region37: #{tpu_custom_call.1} parent=0 // pred_fallthru
    _
  %v32 = vld [vmem:[%s0] sm:$0xff]
  %v33 = vld [vmem:[%s0 + $0x8] sm:$0xff]
  %v34 = vld [vmem:[%s0 + $0x10] sm:$0xff]
  %v35 = vld [vmem:[%s0 + $0x18] sm:$0xff]
  %v36 = vld [vmem:[%s0 + $0x20] sm:$0xff]
  %v37 = vld [vmem:[%s0 + $0x28] sm:$0xff]
  %v38 = vld [vmem:[%s0 + $0x30] sm:$0xff]
  %v39 = vld [vmem:[%s0 + $0x38] sm:$0xff]
  %v40 = vld [vmem:[%s0 + $0x40] sm:$0xff]
  %v41 = vld [vmem:[%s0 + $0x48] sm:$0xff]
  %v42 = vld [vmem:[%s0 + $0x50] sm:$0xff]
  %v43 = vld [vmem:[%s0 + $0x58] sm:$0xff]
  %v44 = vld [vmem:[%s0 + $0x60] sm:$0xff]
  %v45 = vld [vmem:[%s0 + $0x68] sm:$0xff]
  %v46 = vld [vmem:[%s0 + $0x70] sm:$0xff]
  %v47 = vld [vmem:[%s0 + $0x78] sm:$0xff]
  %v48 = vld [vmem:[%s1] sm:$0xff]
  %v49 = vld [vmem:[%s1 + $0x8] sm:$0xff]
  %v50 = vld [vmem:[%s1 + $0x10] sm:$0xff]
  %v51 = vld [vmem:[%s1 + $0x18] sm:$0xff]
  %v52 = vld [vmem:[%s2] sm:$0xff]
  %v53 = vld [vmem:[%s2 + $0x8] sm:$0xff]
  %v54 = vld [vmem:[%s2 + $0x10] sm:$0xff]
  %v55 = vld [vmem:[%s2 + $0x18] sm:$0xff]
  %57 = vset.pattern.permute.xlu0 0
  %58 = vperm.xlu0 %57, %v52
  %v59 = vpop.permute.xlu0 %58
  %62 = vset.pattern.permute.xlu0 0
  %63 = vperm.xlu0 %62, %v53
  %v64 = vpop.permute.xlu0 %63
  %67 = vset.pattern.permute.xlu0 0
  %68 = vperm.xlu0 %67, %v54
  %v69 = vpop.permute.xlu0 %68
  %72 = vset.pattern.permute.xlu0 0
  %73 = vperm.xlu0 %72, %v55
  %v74 = vpop.permute.xlu0 %73
  %vm76 = vcmask 130048
  %v78 = vsel %vm76, %v48, 0
  %v81 = vsel %vm76, %v49, 0
  %v84 = vsel %vm76, %v50, 0
  %v87 = vsel %vm76, %v51, 0
  %v90 = vsel %vm76, %v32, 0
  %v93 = vsel %vm76, %v33, 0
  %v96 = vsel %vm76, %v34, 0
  %v99 = vsel %vm76, %v35, 0
  %v102 = vsel %vm76, %v36, 0
  %v105 = vsel %vm76, %v37, 0
  %v108 = vsel %vm76, %v38, 0
  %v111 = vsel %vm76, %v39, 0
  %v114 = vsel %vm76, %v40, 0
  %v117 = vsel %vm76, %v41, 0
  %v120 = vsel %vm76, %v42, 0
  %v123 = vsel %vm76, %v43, 0
  %v126 = vsel %vm76, %v44, 0
  %v129 = vsel %vm76, %v45, 0
  %v132 = vsel %vm76, %v46, 0
  %v135 = vsel %vm76, %v47, 0
  %137 = vmatpush.xpose.msra.mxu0 %v135
  %138 = vmatpush.xpose.msra.mxu0 %v132
  %139 = vmatpush.xpose.msra.mxu0 %v129
  %140 = vmatpush.xpose.msra.mxu0 %v126
  %141 = vmatpush.xpose.msra.mxu0 %v123
  %142 = vmatpush.xpose.msra.mxu0 %v120
  %143 = vmatpush.xpose.msra.mxu0 %v117
  %144 = vmatpush.xpose.msra.mxu0 %v114
  %145 = vmatpush.xpose.msra.mxu0 %v111
  %146 = vmatpush.xpose.msra.mxu0 %v108
  %147 = vmatpush.xpose.msra.mxu0 %v105
  %148 = vmatpush.xpose.msra.mxu0 %v102
  %149 = vmatpush.xpose.msra.mxu0 %v99
  %150 = vmatpush.xpose.msra.mxu0 %v96
  %151 = vmatpush.xpose.msra.mxu0 %v93
  %152 = vmatpush.xpose.msra.mxu0 %v90
  %153 = vmatmul.f32.gmra.mxu0 %v78
  %v154 = vpop.f32.mrf.mxu0
  %v155 = vadd.f32 %v59, %v154
  %156 = vmatmul.f32.gmra.mxu0 %v81
  %v157 = vpop.f32.mrf.mxu0
  %v158 = vadd.f32 %v64, %v157
  %159 = vmatmul.f32.gmra.mxu0 %v84
  %v160 = vpop.f32.mrf.mxu0
  %v161 = vadd.f32 %v69, %v160
  %162 = vmatmul.f32.gmra.mxu0 %v87
  %v163 = vpop.f32.mrf.mxu0
  %v164 = vadd.f32 %v74, %v163
  %165 = vdwg.mxu0
  %vm166 = vcmp.gt.f32.partialorder %v155, 0.0
  %vm167 = vcmp.gt.f32.partialorder %v158, 0.0
  %vm168 = vcmp.gt.f32.partialorder %v161, 0.0
  %vm169 = vcmp.gt.f32.partialorder %v164, 0.0
  %v170 = vmul.f32 %v155, 0.2
  %v171 = vmul.f32 %v158, 0.2
  %v172 = vmul.f32 %v161, 0.2
  %v173 = vmul.f32 %v164, 0.2
  %v174 = vsel %vm166, %v155, %v170
  %v175 = vsel %vm167, %v158, %v171
  %v176 = vsel %vm168, %v161, %v172
  %v177 = vsel %vm169, %v164, %v173
  %v178 = vld [vmem:[%s3] sm:$0xff]
  %v179 = vld [vmem:[%s3 + $0x8] sm:$0xff]
  %v180 = vld [vmem:[%s3 + $0x10] sm:$0xff]
  %v181 = vld [vmem:[%s3 + $0x18] sm:$0xff]
  %v182 = vld [vmem:[%s3 + $0x20] sm:$0xff]
  %v183 = vld [vmem:[%s3 + $0x28] sm:$0xff]
  %v184 = vld [vmem:[%s3 + $0x30] sm:$0xff]
  %v185 = vld [vmem:[%s3 + $0x38] sm:$0xff]
  %v186 = vld [vmem:[%s4] sm:$0xff]
  %v187 = vld [vmem:[%s4 + $0x8] sm:$0xff]
  %v188 = vld [vmem:[%s4 + $0x10] sm:$0xff]
  %v189 = vld [vmem:[%s4 + $0x18] sm:$0xff]
  %v190 = vld [vmem:[%s4 + $0x20] sm:$0xff]
  %v191 = vld [vmem:[%s4 + $0x28] sm:$0xff]
  %v192 = vld [vmem:[%s4 + $0x30] sm:$0xff]
  %v193 = vld [vmem:[%s4 + $0x38] sm:$0xff]
  %195 = vset.pattern.permute.xlu0 0
  %196 = vperm.xlu0 %195, %v186
  %v197 = vpop.permute.xlu0 %196
  %200 = vset.pattern.permute.xlu0 0
  %201 = vperm.xlu0 %200, %v187
  %v202 = vpop.permute.xlu0 %201
  %205 = vset.pattern.permute.xlu0 0
  %206 = vperm.xlu0 %205, %v188
  %v207 = vpop.permute.xlu0 %206
  %210 = vset.pattern.permute.xlu0 0
  %211 = vperm.xlu0 %210, %v189
  %v212 = vpop.permute.xlu0 %211
  %215 = vset.pattern.permute.xlu0 0
  %216 = vperm.xlu0 %215, %v190
  %v217 = vpop.permute.xlu0 %216
  %220 = vset.pattern.permute.xlu0 0
  %221 = vperm.xlu0 %220, %v191
  %v222 = vpop.permute.xlu0 %221
  %225 = vset.pattern.permute.xlu0 0
  %226 = vperm.xlu0 %225, %v192
  %v227 = vpop.permute.xlu0 %226
  %230 = vset.pattern.permute.xlu0 0
  %231 = vperm.xlu0 %230, %v193
  %v232 = vpop.permute.xlu0 %231
  %vm234 = vcmask 261120
  %v236 = vsel %vm234, %v178, 0
  %v239 = vsel %vm234, %v179, 0
  %v242 = vsel %vm234, %v180, 0
  %v245 = vsel %vm234, %v181, 0
  %v248 = vsel %vm234, %v182, 0
  %v251 = vsel %vm234, %v183, 0
  %v254 = vsel %vm234, %v184, 0
  %v257 = vsel %vm234, %v185, 0
  %259 = vmatpush.msra.mxu0 0.0
  %260 = vmatpush.msra.mxu0 0.0
  %261 = vmatpush.msra.mxu0 0.0
  %262 = vmatpush.msra.mxu0 0.0
  %263 = vmatpush.msra.mxu0 0.0
  %264 = vmatpush.msra.mxu0 0.0
  %265 = vmatpush.msra.mxu0 0.0
  %266 = vmatpush.msra.mxu0 0.0
  %267 = vmatpush.msra.mxu0 0.0
  %268 = vmatpush.msra.mxu0 0.0
  %269 = vmatpush.msra.mxu0 0.0
  %270 = vmatpush.msra.mxu0 0.0
  %271 = vmatpush.msra.mxu0 %v177
  %272 = vmatpush.msra.mxu0 %v176
  %273 = vmatpush.msra.mxu0 %v175
  %274 = vmatpush.msra.mxu0 %v174
  %275 = vmatmul.f32.gmra.mxu0 %v236
  %v276 = vpop.f32.mrf.mxu0
  %v277 = vadd.f32 %v197, %v276
  %278 = vmatmul.f32.gmra.mxu0 %v239
  %v279 = vpop.f32.mrf.mxu0
  %v280 = vadd.f32 %v202, %v279
  %281 = vmatmul.f32.gmra.mxu0 %v242
  %v282 = vpop.f32.mrf.mxu0
  %v283 = vadd.f32 %v207, %v282
  %284 = vmatmul.f32.gmra.mxu0 %v245
  %v285 = vpop.f32.mrf.mxu0
  %v286 = vadd.f32 %v212, %v285
  %287 = vmatmul.f32.gmra.mxu0 %v248
  %v288 = vpop.f32.mrf.mxu0
  %v289 = vadd.f32 %v217, %v288
  %290 = vmatmul.f32.gmra.mxu0 %v251
  %v291 = vpop.f32.mrf.mxu0
  %v292 = vadd.f32 %v222, %v291
  %293 = vmatmul.f32.gmra.mxu0 %v254
  %v294 = vpop.f32.mrf.mxu0
  %v295 = vadd.f32 %v227, %v294
  %296 = vmatmul.f32.gmra.mxu0 %v257
  %v297 = vpop.f32.mrf.mxu0
  %v298 = vadd.f32 %v232, %v297
  %299 = vdwg.mxu0
  %vm300 = vcmp.gt.f32.partialorder %v277, 0.0
  %vm301 = vcmp.gt.f32.partialorder %v280, 0.0
  %vm302 = vcmp.gt.f32.partialorder %v283, 0.0
  %vm303 = vcmp.gt.f32.partialorder %v286, 0.0
  %vm304 = vcmp.gt.f32.partialorder %v289, 0.0
  %vm305 = vcmp.gt.f32.partialorder %v292, 0.0
  %vm306 = vcmp.gt.f32.partialorder %v295, 0.0
  %vm307 = vcmp.gt.f32.partialorder %v298, 0.0
  %v308 = vmul.f32 %v277, 0.2
  %v309 = vmul.f32 %v280, 0.2
  %v310 = vmul.f32 %v283, 0.2
  %v311 = vmul.f32 %v286, 0.2
  %v312 = vmul.f32 %v289, 0.2
  %v313 = vmul.f32 %v292, 0.2
  %v314 = vmul.f32 %v295, 0.2
  %v315 = vmul.f32 %v298, 0.2
  %v316 = vsel %vm300, %v277, %v308
  %v317 = vsel %vm301, %v280, %v309
  %v318 = vsel %vm302, %v283, %v310
  %v319 = vsel %vm303, %v286, %v311
  %v320 = vsel %vm304, %v289, %v312
  %v321 = vsel %vm305, %v292, %v313
  %v322 = vsel %vm306, %v295, %v314
  %v323 = vsel %vm307, %v298, %v315
  %v324 = vld [vmem:[%s5] sm:$0xff]
  %v325 = vld [vmem:[%s5 + $0x8] sm:$0xff]
  %v326 = vld [vmem:[%s5 + $0x10] sm:$0xff]
  %v327 = vld [vmem:[%s5 + $0x18] sm:$0xff]
  %v328 = vld [vmem:[%s6] sm:$0xff]
  %v329 = vld [vmem:[%s6 + $0x8] sm:$0xff]
  %v330 = vld [vmem:[%s6 + $0x10] sm:$0xff]
  %v331 = vld [vmem:[%s6 + $0x18] sm:$0xff]
  %333 = vset.pattern.permute.xlu0 0
  %334 = vperm.xlu0 %333, %v328
  %v335 = vpop.permute.xlu0 %334
  %338 = vset.pattern.permute.xlu0 0
  %339 = vperm.xlu0 %338, %v329
  %v340 = vpop.permute.xlu0 %339
  %343 = vset.pattern.permute.xlu0 0
  %344 = vperm.xlu0 %343, %v330
  %v345 = vpop.permute.xlu0 %344
  %348 = vset.pattern.permute.xlu0 0
  %349 = vperm.xlu0 %348, %v331
  %v350 = vpop.permute.xlu0 %349
  %vm352 = vcmask 523264
  %v354 = vsel %vm352, %v324, 0
  %v357 = vsel %vm352, %v325, 0
  %v360 = vsel %vm352, %v326, 0
  %v363 = vsel %vm352, %v327, 0
  %365 = vmatpush.msra.mxu0 0.0
  %366 = vmatpush.msra.mxu0 0.0
  %367 = vmatpush.msra.mxu0 0.0
  %368 = vmatpush.msra.mxu0 0.0
  %369 = vmatpush.msra.mxu0 0.0
  %370 = vmatpush.msra.mxu0 0.0
  %371 = vmatpush.msra.mxu0 0.0
  %372 = vmatpush.msra.mxu0 0.0
  %373 = vmatpush.msra.mxu0 %v323
  %374 = vmatpush.msra.mxu0 %v322
  %375 = vmatpush.msra.mxu0 %v321
  %376 = vmatpush.msra.mxu0 %v320
  %377 = vmatpush.msra.mxu0 %v319
  %378 = vmatpush.msra.mxu0 %v318
  %379 = vmatpush.msra.mxu0 %v317
  %380 = vmatpush.msra.mxu0 %v316
  %381 = vmatmul.f32.gmra.mxu0 %v354
  %v382 = vpop.f32.mrf.mxu0
  %v383 = vadd.f32 %v335, %v382
  %384 = vmatmul.f32.gmra.mxu0 %v357
  %v385 = vpop.f32.mrf.mxu0
  %v386 = vadd.f32 %v340, %v385
  %387 = vmatmul.f32.gmra.mxu0 %v360
  %v388 = vpop.f32.mrf.mxu0
  %v389 = vadd.f32 %v345, %v388
  %390 = vmatmul.f32.gmra.mxu0 %v363
  %v391 = vpop.f32.mrf.mxu0
  %v392 = vadd.f32 %v350, %v391
  %393 = vdwg.mxu0
  %vm394 = vcmp.gt.f32.partialorder %v383, 0.0
  %vm395 = vcmp.gt.f32.partialorder %v386, 0.0
  %vm396 = vcmp.gt.f32.partialorder %v389, 0.0
  %vm397 = vcmp.gt.f32.partialorder %v392, 0.0
  %v398 = vmul.f32 %v383, 0.2
  %v399 = vmul.f32 %v386, 0.2
  %v400 = vmul.f32 %v389, 0.2
  %v401 = vmul.f32 %v392, 0.2
  %v402 = vsel %vm394, %v383, %v398
  %v403 = vsel %vm395, %v386, %v399
  %v404 = vsel %vm396, %v389, %v400
  %v405 = vsel %vm397, %v392, %v401
  %v406 = vld [vmem:[%s7] sm:$0xff]
  %v407 = vld [vmem:[%s7 + $0x8] sm:$0xff]
  %v408 = vld [vmem:[%s8] sm:$0xff]
  %v409 = vld [vmem:[%s8 + $0x8] sm:$0xff]
  %411 = vset.pattern.permute.xlu0 0
  %412 = vperm.xlu0 %411, %v408
  %v413 = vpop.permute.xlu0 %412
  %416 = vset.pattern.permute.xlu0 0
  %417 = vperm.xlu0 %416, %v409
  %v418 = vpop.permute.xlu0 %417
  %v421 = vsel %vm234, %v406, 0
  %v424 = vsel %vm234, %v407, 0
  %426 = vmatpush.msra.mxu0 0.0
  %427 = vmatpush.msra.mxu0 0.0
  %428 = vmatpush.msra.mxu0 0.0
  %429 = vmatpush.msra.mxu0 0.0
  %430 = vmatpush.msra.mxu0 0.0
  %431 = vmatpush.msra.mxu0 0.0
  %432 = vmatpush.msra.mxu0 0.0
  %433 = vmatpush.msra.mxu0 0.0
  %434 = vmatpush.msra.mxu0 0.0
  %435 = vmatpush.msra.mxu0 0.0
  %436 = vmatpush.msra.mxu0 0.0
  %437 = vmatpush.msra.mxu0 0.0
  %438 = vmatpush.msra.mxu0 %v405
  %439 = vmatpush.msra.mxu0 %v404
  %440 = vmatpush.msra.mxu0 %v403
  %441 = vmatpush.msra.mxu0 %v402
  %442 = vmatmul.f32.gmra.mxu0 %v421
  %v443 = vpop.f32.mrf.mxu0
  %v444 = vadd.f32 %v413, %v443
  %445 = vmatmul.f32.gmra.mxu0 %v424
  %v446 = vpop.f32.mrf.mxu0
  %v447 = vadd.f32 %v418, %v446
  %448 = vdwg.mxu0
  %v449 = vtanh.pop %v444
  %v450 = vtanh.pop %v447
  %451 = vxpose.xlu0.b32.start [1/16] %v449, 128
  %452 = vxpose.xlu0.b32.cont [2/16] %v450, 128
  %453 = vxpose.xlu0.b32.cont [3/16] 0.0, 128
  %454 = vxpose.xlu0.b32.cont [4/16] 0.0, 128
  %455 = vxpose.xlu0.b32.cont [5/16] 0.0, 128
  %456 = vxpose.xlu0.b32.cont [6/16] 0.0, 128
  %457 = vxpose.xlu0.b32.cont [7/16] 0.0, 128
  %458 = vxpose.xlu0.b32.cont [8/16] 0.0, 128
  %459 = vxpose.xlu0.b32.cont [9/16] 0.0, 128
  %460 = vxpose.xlu0.b32.cont [10/16] 0.0, 128
  %461 = vxpose.xlu0.b32.cont [11/16] 0.0, 128
  %462 = vxpose.xlu0.b32.cont [12/16] 0.0, 128
  %463 = vxpose.xlu0.b32.cont [13/16] 0.0, 128
  %464 = vxpose.xlu0.b32.cont [14/16] 0.0, 128
  %465 = vxpose.xlu0.b32.cont [15/16] 0.0, 128
  %466 = vxpose.xlu0.b32.end [16/16] 0.0, 128
  %v467 = vpop.trf.xlu0
  %v468 = vpop.trf.xlu0
  %v469 = vpop.trf.xlu0
  %v470 = vpop.trf.xlu0
  %v471 = vpop.trf.xlu0
  %v472 = vpop.trf.xlu0
  %v473 = vpop.trf.xlu0
  %v474 = vpop.trf.xlu0
  %v475 = vpop.trf.xlu0
  %v476 = vpop.trf.xlu0
  %v477 = vpop.trf.xlu0
  %v478 = vpop.trf.xlu0
  %v479 = vpop.trf.xlu0
  %v480 = vpop.trf.xlu0
  %v481 = vpop.trf.xlu0
  %v482 = vpop.trf.xlu0
  %483 = vst.msk [vmem:[%s9] sm:$0xff] %vm76, %v467
  %484 = vst.msk [vmem:[%s9 + $0x8] sm:$0xff] %vm76, %v468
  %485 = vst.msk [vmem:[%s9 + $0x10] sm:$0xff] %vm76, %v469
  %486 = vst.msk [vmem:[%s9 + $0x18] sm:$0xff] %vm76, %v470
  %487 = vst.msk [vmem:[%s9 + $0x20] sm:$0xff] %vm76, %v471
  %488 = vst.msk [vmem:[%s9 + $0x28] sm:$0xff] %vm76, %v472
  %489 = vst.msk [vmem:[%s9 + $0x30] sm:$0xff] %vm76, %v473
  %490 = vst.msk [vmem:[%s9 + $0x38] sm:$0xff] %vm76, %v474
  %491 = vst.msk [vmem:[%s9 + $0x40] sm:$0xff] %vm76, %v475
  %492 = vst.msk [vmem:[%s9 + $0x48] sm:$0xff] %vm76, %v476
  %493 = vst.msk [vmem:[%s9 + $0x50] sm:$0xff] %vm76, %v477
  %494 = vst.msk [vmem:[%s9 + $0x58] sm:$0xff] %vm76, %v478
  %495 = vst.msk [vmem:[%s9 + $0x60] sm:$0xff] %vm76, %v479
  %496 = vst.msk [vmem:[%s9 + $0x68] sm:$0xff] %vm76, %v480
  %497 = vst.msk [vmem:[%s9 + $0x70] sm:$0xff] %vm76, %v481
  %498 = vst.msk [vmem:[%s9 + $0x78] sm:$0xff] %vm76, %v482
  // Predicated region
  $region38: #{tpu_custom_call.1} parent=0 // pred_check
    _
  $region39: #{tpu_custom_call.1} parent=0 // pred_check_branch
    %500 = sbr.rel (0) target = $region41
  $region40: #{tpu_custom_call.1} parent=0 // pred_region
    _
  $region41: #{tpu_custom_call.1} parent=0 // pred_fallthru
    _
  // Predicated region
  $region42: #{tpu_custom_call.1} parent=0 // pred_check
    _
  $region43: #{tpu_custom_call.1} parent=0 // pred_check_branch
    %502 = sbr.rel (0) target = $region45
  $region44: #{tpu_custom_call.1} parent=0 // pred_region
    _
  $region45: #{tpu_custom_call.1} parent=0 // pred_fallthru
    _

</llo_original>
